<compile_context>
chip_gen: v7x
topology: tpu7x:2x2x1
jax: 0.10.0
libtpu: 0.0.40
codegen_flags: <defaults>
</compile_context>

<pallas_src>
import jax
import jax.numpy as jnp
from jax import lax
from jax.experimental import pallas as pl
from jax.experimental.pallas import tpu as pltpu


def pack_params(lw, lb, rw, rb):
    """Pack left_linear (1,C1)/(1,) and right_linear (OUT,C0)/(OUT,) into one buffer.

    Layout (rows x cols) = (max(C1,C0)+1, 1+OUT):
      col 0      : rows [0:C1] = left weight (as column), row C1 = left bias
      cols 1:1+OUT: rows [0:C0] = right weight transposed, row C0 = right bias
    """
    C1 = lw.shape[1]
    out_dim, C0 = rw.shape
    PR = max(C1, C0) + 1
    PC = 1 + out_dim
    P = jnp.zeros((PR, PC), jnp.float32)
    P = P.at[:C1, 0].set(lw[0])
    P = P.at[C1, 0].set(lb[0])
    P = P.at[:C0, 1:1 + out_dim].set(rw.T)
    P = P.at[C0, 1:1 + out_dim].set(rb)
    return P


def qgcn_last_layer(A, x0, x1, packed_params, out_dim):
    """A: (B,N,N) f32, x0: (B,N,C0) f32, x1: (B,N,C1) f32 -> (B, out_dim) f32."""
    B, N, _ = A.shape
    C0 = x0.shape[2]
    C1 = x1.shape[2]
    PR, PC = packed_params.shape

    def kernel(a_ref, x0_ref, x1_ref, p_ref, out_ref):
        A_g = a_ref[...]      # (N, N)
        x0_g = x0_ref[...]    # (N, C0)
        x1_g = x1_ref[...]    # (N, C1)

        # static slices of the packed parameter buffer (zero-cost views)
        lw_col = p_ref[:C1, 0:1]               # (C1, 1)   left weight^T
        lb = p_ref[C1:C1 + 1, 0:1]             # (1, 1)    left bias
        rw_t = p_ref[:C0, 1:1 + out_dim]       # (C0, OUT) right weight^T
        rb = p_ref[C0:C0 + 1, 1:1 + out_dim]   # (1, OUT)  right bias

        # y = x1 @ Wl^T                               (N, 1)
        y = jnp.dot(x1_g, lw_col, preferred_element_type=jnp.float32)
        # W2_x1_A = A^T y + bl ;  here its transpose: y^T A + bl   (1, N)
        w2t = lax.dot_general(y, A_g, (((0,), (0,)), ((), ())),
                              preferred_element_type=jnp.float32) + lb
        # z = W2_x1_A^T @ x0                          (1, C0)
        z = jnp.dot(w2t, x0_g, preferred_element_type=jnp.float32)
        # out = z @ Wr^T + br                         (1, OUT)
        out_ref[...] = (jnp.dot(z, rw_t, preferred_element_type=jnp.float32)
                        + rb).astype(out_ref.dtype)

    out = pl.pallas_call(
        kernel,
        out_shape=jax.ShapeDtypeStruct((B, 1, out_dim), jnp.float32),
        grid=(B,),
        in_specs=[
            pl.BlockSpec((None, N, N), lambda b: (b, 0, 0)),
            pl.BlockSpec((None, N, C0), lambda b: (b, 0, 0)),
            pl.BlockSpec((None, N, C1), lambda b: (b, 0, 0)),
            # constant block index -> parameter buffer DMA'd once, stays resident
            pl.BlockSpec((PR, PC), lambda b: (0, 0)),
        ],
        out_specs=pl.BlockSpec((None, 1, out_dim), lambda b: (b, 0, 0)),
        compiler_params=pltpu.CompilerParams(dimension_semantics=("parallel",)),
    )(A, x0, x1, packed_params)
    return out.reshape(B, out_dim)   # == .squeeze(dim=1)


def reference(A, x0, x1, lw, lb, rw, rb):
    """Pure-JAX transcription of the PyTorch forward."""
    x1_A = jnp.matmul(jnp.swapaxes(x1, 1, 2), A)            # (B, C1, N)
    W2 = jnp.matmul(jnp.swapaxes(x1_A, 1, 2), lw.T) + lb    # (B, N, 1)
    W2x0 = jnp.matmul(jnp.swapaxes(W2, 1, 2), x0)           # (B, 1, C0)
    out = jnp.matmul(W2x0, rw.T) + rb                       # (B, 1, OUT)
    return out[:, 0, :]                                     # squeeze(dim=1)


if __name__ == "__main__":
    key = jax.random.PRNGKey(0)
    k_a, k_x0, k_x1, k_lw, k_lb, k_rw, k_rb = jax.random.split(key, 7)

    # small shapes consistent with the module: B graphs of N nodes,
    # right_in_dim (x0 features) = 8, left_in_dim (x1 features) = 4, out_dim = 2
    B, N, C0, C1, OUT = 8, 16, 8, 4, 2

    # dense 0/1 adjacency with self-loops
    A = (jax.random.uniform(k_a, (B, N, N)) > 0.5).astype(jnp.float32)
    A = jnp.maximum(A, jnp.eye(N, dtype=jnp.float32)[None])
    x0 = jax.random.normal(k_x0, (B, N, C0), dtype=jnp.float32)
    x1 = jax.random.normal(k_x1, (B, N, C1), dtype=jnp.float32)

    # PyTorch nn.Linear default init: U(-1/sqrt(in), 1/sqrt(in))
    bl_ = 1.0 / (C1 ** 0.5)
    br_ = 1.0 / (C0 ** 0.5)
    lw = jax.random.uniform(k_lw, (1, C1), jnp.float32, -bl_, bl_)     # left_linear.weight
    lb = jax.random.uniform(k_lb, (1,), jnp.float32, -bl_, bl_)        # left_linear.bias
    rw = jax.random.uniform(k_rw, (OUT, C0), jnp.float32, -br_, br_)   # right_linear.weight
    rb = jax.random.uniform(k_rb, (OUT,), jnp.float32, -br_, br_)      # right_linear.bias

    packed = pack_params(lw, lb, rw, rb)

    run = jax.jit(lambda a, f0, f1, p: qgcn_last_layer(a, f0, f1, p, OUT))
    out = run(A, x0, x1, packed)
    jax.block_until_ready(out)

    ref = reference(A, x0, x1, lw, lb, rw, rb)
    assert out.shape == (B, OUT)
    assert jnp.allclose(out, ref, atol=1e-2, rtol=1e-2)
    print("KERNEL_OK")
</pallas_src>

<mosaic_0001>
module attributes {stable_mosaic.version = 11 : i64} {
  func.func @kernel(%arg0: i32, %arg1: memref<1x16x16xf32, #tpu.memory_space<vmem>>, %arg2: memref<1x16x8xf32, #tpu.memory_space<vmem>>, %arg3: memref<1x16x4xf32, #tpu.memory_space<vmem>>, %arg4: memref<9x3xf32, #tpu.memory_space<vmem>>, %arg5: memref<1x1x2xf32, #tpu.memory_space<vmem>>) attributes {dimension_semantics = [#tpu.dimension_semantics<parallel>], iteration_bounds = array<i64: 8>, scalar_prefetch = 0 : i64, scratch_operands = 0 : i64, tpu.core_type = #tpu.core_type<tc>, window_params = [{transform_indices = @transform_0, window_bounds = array<i64: 1, 16, 16>}, {transform_indices = @transform_1, window_bounds = array<i64: 1, 16, 8>}, {transform_indices = @transform_2, window_bounds = array<i64: 1, 16, 4>}, {pipeline_mode = #tpu.pipeline_mode<synchronous>, transform_indices = @transform_3, window_bounds = array<i64: 9, 3>}, {transform_indices = @transform_4, window_bounds = array<i64: 1, 1, 2>}]} {
    %c0 = arith.constant 0 : index
    %c0_0 = arith.constant 0 : index
    %c0_1 = arith.constant 0 : index
    %0 = vector.load %arg1[%c0, %c0_0, %c0_1] : memref<1x16x16xf32, #tpu.memory_space<vmem>>, vector<1x16x16xf32>
    %1 = vector.shape_cast %0 : vector<1x16x16xf32> to vector<16x16xf32>
    %c0_2 = arith.constant 0 : index
    %c0_3 = arith.constant 0 : index
    %c0_4 = arith.constant 0 : index
    %2 = vector.load %arg2[%c0_2, %c0_3, %c0_4] : memref<1x16x8xf32, #tpu.memory_space<vmem>>, vector<1x16x8xf32>
    %3 = vector.shape_cast %2 : vector<1x16x8xf32> to vector<16x8xf32>
    %c0_5 = arith.constant 0 : index
    %c0_6 = arith.constant 0 : index
    %c0_7 = arith.constant 0 : index
    %4 = vector.load %arg3[%c0_5, %c0_6, %c0_7] : memref<1x16x4xf32, #tpu.memory_space<vmem>>, vector<1x16x4xf32>
    %5 = vector.shape_cast %4 : vector<1x16x4xf32> to vector<16x4xf32>
    %c0_8 = arith.constant 0 : index
    %c0_9 = arith.constant 0 : index
    %6 = vector.load %arg4[%c0_8, %c0_9] : memref<9x3xf32, #tpu.memory_space<vmem>>, vector<4x1xf32>
    %c4 = arith.constant 4 : index
    %c0_10 = arith.constant 0 : index
    %7 = vector.load %arg4[%c4, %c0_10] : memref<9x3xf32, #tpu.memory_space<vmem>>, vector<1x1xf32>
    %c0_11 = arith.constant 0 : index
    %c1 = arith.constant 1 : index
    %8 = vector.load %arg4[%c0_11, %c1] : memref<9x3xf32, #tpu.memory_space<vmem>>, vector<8x2xf32>
    %c8 = arith.constant 8 : index
    %c1_12 = arith.constant 1 : index
    %9 = vector.load %arg4[%c8, %c1_12] : memref<9x3xf32, #tpu.memory_space<vmem>>, vector<1x2xf32>
    %cst = arith.constant dense<0.000000e+00> : vector<16x1xf32>
    %10 = tpu.matmul %5, %6, %cst {dimension_numbers = #tpu.dot_dimension_numbers<[1], [0], [0], [1], [0, 0, 1, 1], [], []>} : vector<16x4xf32>, vector<4x1xf32>, vector<16x1xf32> -> vector<16x1xf32>
    %cst_13 = arith.constant dense<0.000000e+00> : vector<1x16xf32>
    %11 = tpu.matmul %10, %1, %cst_13 {dimension_numbers = #tpu.dot_dimension_numbers<[0], [0], [1], [1], [0, 1, 1, 1], [], []>} : vector<16x1xf32>, vector<16x16xf32>, vector<1x16xf32> -> vector<1x16xf32>
    %12 = vector.broadcast %7 : vector<1x1xf32> to vector<1x16xf32>
    %13 = arith.addf %11, %12 : vector<1x16xf32>
    %cst_14 = arith.constant dense<0.000000e+00> : vector<1x8xf32>
    %14 = tpu.matmul %13, %3, %cst_14 {dimension_numbers = #tpu.dot_dimension_numbers<[1], [0], [0], [1], [0, 0, 1, 1], [], []>} : vector<1x16xf32>, vector<16x8xf32>, vector<1x8xf32> -> vector<1x8xf32>
    %cst_15 = arith.constant dense<0.000000e+00> : vector<1x2xf32>
    %15 = tpu.matmul %14, %8, %cst_15 {dimension_numbers = #tpu.dot_dimension_numbers<[1], [0], [0], [1], [0, 0, 1, 1], [], []>} : vector<1x8xf32>, vector<8x2xf32>, vector<1x2xf32> -> vector<1x2xf32>
    %16 = arith.addf %15, %9 : vector<1x2xf32>
    %c0_16 = arith.constant 0 : index
    %c0_17 = arith.constant 0 : index
    %c0_18 = arith.constant 0 : index
    %17 = vector.load %arg5[%c0_16, %c0_17, %c0_18] : memref<1x1x2xf32, #tpu.memory_space<vmem>>, vector<1x1x2xf32>
    %18 = vector.shape_cast %17 : vector<1x1x2xf32> to vector<1x2xf32>
    %19 = vector.shape_cast %16 : vector<1x2xf32> to vector<1x1x2xf32>
    tpu.vector_store %arg5[%c0_16, %c0_17, %c0_18], %19 {strides = array<i32>} : memref<1x1x2xf32, #tpu.memory_space<vmem>>, vector<1x1x2xf32>,
    return
  }
  func.func @transform_0(%arg0: i32) -> (i32, i32, i32) {
    %c0_i32 = arith.constant 0 : i32
    %c0_i32_0 = arith.constant 0 : i32
    %c0_i32_1 = arith.constant 0 : i32
    return %arg0, %c0_i32, %c0_i32_0 : i32, i32, i32
  }
  func.func @transform_1(%arg0: i32) -> (i32, i32, i32) {
    %c0_i32 = arith.constant 0 : i32
    %c0_i32_0 = arith.constant 0 : i32
    %c0_i32_1 = arith.constant 0 : i32
    return %arg0, %c0_i32, %c0_i32_0 : i32, i32, i32
  }
  func.func @transform_2(%arg0: i32) -> (i32, i32, i32) {
    %c0_i32 = arith.constant 0 : i32
    %c0_i32_0 = arith.constant 0 : i32
    %c0_i32_1 = arith.constant 0 : i32
    return %arg0, %c0_i32, %c0_i32_0 : i32, i32, i32
  }
  func.func @transform_3(%arg0: i32) -> (i32, i32) {
    %c0_i32 = arith.constant 0 : i32
    %c0_i32_0 = arith.constant 0 : i32
    %c0_i32_1 = arith.constant 0 : i32
    return %c0_i32, %c0_i32_0 : i32, i32
  }
  func.func @transform_4(%arg0: i32) -> (i32, i32, i32) {
    %c0_i32 = arith.constant 0 : i32
    %c0_i32_0 = arith.constant 0 : i32
    %c0_i32_1 = arith.constant 0 : i32
    return %arg0, %c0_i32, %c0_i32_0 : i32, i32, i32
  }
}

</mosaic_0001>

<llo_original>
// kernel: _lambda_.1
$region0: #{_lambda_.1}
  #allocation0 [shape = 'u32[]', space=smem, size = 0x4, offset = 0x4, fixed_abs, tag = 'smem constant byte address 0x4 - core index']
  #allocation1 [shape = 'u32[144,128]{1,0:T(1,128)}', space=vmem, size = 0x12000, scoped, tag = 'internal scratch']
  %s0 = inlined_call_operand.vmem [shape: f32[8,16,16], index: 0, kind: input, shape index: {}]
  %s1 = inlined_call_operand.vmem [shape: f32[8,16,8], index: 1, kind: input, shape index: {}]
  %s2 = inlined_call_operand.vmem [shape: f32[8,16,4], index: 2, kind: input, shape index: {}]
  %s3 = inlined_call_operand.vmem [shape: f32[9,3], index: 3, kind: input, shape index: {}]
  %s4 = inlined_call_operand.vmem [shape: f32[8,1,2], index: 4, kind: output, shape index: {}]
  %s5 = sld [smem:[#allocation0]]
  $region49: #{_lambda_.1} parent=0
    _
  %s7 = ssub.s32 1, %s5
  %s8 = scalar_select 0, %s7, %s5
  loop: start=0, step=1, limit=10
  $region2: #{_lambda_.1} parent=0 // loop_pre_header
    _
  $region3: #{_lambda_.1} parent=0 // loop_header
    %s10 = sphi 0, %s14
    %p11 = scmp.ge.s32.totalorder %s10, 10
    %s20 = sphi 0, %s22
    %s23 = sphi 0, %s20
    %s24 = sphi 0, %s23
    %s40 = sphi 0, %s24
    %s46 = sphi 0, %s48
    %s49 = sphi 0, %s46
    %s50 = sphi 0, %s49
    %s66 = sphi 0, %s50
    %s72 = sphi 0, %s74
    %s75 = sphi 0, %s72
    %s76 = sphi 0, %s75
    %s92 = sphi 0, %s76
    %s96 = sphi 0, %s96
    %s98 = sphi 0, %s96
    %s99 = sphi 0, %s98
    %s113 = sphi 0, %s99
    %s119 = sphi 0, %s121
    %s122 = sphi 0, %s119
    %s123 = sphi 0, %s122
    %s139 = sphi 0, %s123
  $region4: #{_lambda_.1} parent=0 // loop_header_branch
    %13 = sbr.rel (%p11) target = $region8
  $region5: #{_lambda_.1} parent=0 // loop_body
    %s15 = ssub.s32 %s10, 1
    %s16 = ssub.s32 %s10, 2
    %s17 = sadd.s32 %s10, 1
    %s18 = ssub.s32 %s10, %s17
    %p19 = scmp.eq.s32.totalorder %s18, 0
    %s21 = sadd.s32 %s20, 1
    %s22 = scalar_select %p19, %s20, %s21
    %p25 = pneg %p19
    %p26 = scmp.eq.s32.totalorder %s10, 7
    %p27 = por %p25, %p26
    %p28 = scmp.ne.s32.totalorder %s20, %s23
    %p29 = scmp.eq.s32.totalorder %s10, 0
    %p30 = por %p28, %p29
    %p31 = scmp.ne.s32.totalorder %s20, %s23
    %p32 = scmp.eq.s32.totalorder %s15, 7
    %p33 = por %p31, %p32
    %p34 = scmp.ne.s32.totalorder %s23, %s24
    %p35 = scmp.eq.s32.totalorder %s15, 0
    %p36 = por %p34, %p35
    %p37 = scmp.ne.s32.totalorder %s23, %s24
    %p38 = scmp.eq.s32.totalorder %s16, 7
    %p39 = por %p37, %p38
    %p41 = scmp.ne.s32.totalorder %s24, %s40
    %p42 = scmp.eq.s32.totalorder %s16, 0
    %p43 = por %p41, %p42
    %s44 = ssub.s32 %s10, %s17
    %p45 = scmp.eq.s32.totalorder %s44, 0
    %s47 = sadd.s32 %s46, 1
    %s48 = scalar_select %p45, %s46, %s47
    %p51 = pneg %p45
    %p52 = scmp.eq.s32.totalorder %s10, 7
    %p53 = por %p51, %p52
    %p54 = scmp.ne.s32.totalorder %s46, %s49
    %p55 = scmp.eq.s32.totalorder %s10, 0
    %p56 = por %p54, %p55
    %p57 = scmp.ne.s32.totalorder %s46, %s49
    %p58 = scmp.eq.s32.totalorder %s15, 7
    %p59 = por %p57, %p58
    %p60 = scmp.ne.s32.totalorder %s49, %s50
    %p61 = scmp.eq.s32.totalorder %s15, 0
    %p62 = por %p60, %p61
    %p63 = scmp.ne.s32.totalorder %s49, %s50
    %p64 = scmp.eq.s32.totalorder %s16, 7
    %p65 = por %p63, %p64
    %p67 = scmp.ne.s32.totalorder %s50, %s66
    %p68 = scmp.eq.s32.totalorder %s16, 0
    %p69 = por %p67, %p68
    %s70 = ssub.s32 %s10, %s17
    %p71 = scmp.eq.s32.totalorder %s70, 0
    %s73 = sadd.s32 %s72, 1
    %s74 = scalar_select %p71, %s72, %s73
    %p77 = pneg %p71
    %p78 = scmp.eq.s32.totalorder %s10, 7
    %p79 = por %p77, %p78
    %p80 = scmp.ne.s32.totalorder %s72, %s75
    %p81 = scmp.eq.s32.totalorder %s10, 0
    %p82 = por %p80, %p81
    %p83 = scmp.ne.s32.totalorder %s72, %s75
    %p84 = scmp.eq.s32.totalorder %s15, 7
    %p85 = por %p83, %p84
    %p86 = scmp.ne.s32.totalorder %s75, %s76
    %p87 = scmp.eq.s32.totalorder %s15, 0
    %p88 = por %p86, %p87
    %p89 = scmp.ne.s32.totalorder %s75, %s76
    %p90 = scmp.eq.s32.totalorder %s16, 7
    %p91 = por %p89, %p90
    %p93 = scmp.ne.s32.totalorder %s76, %s92
    %p94 = scmp.eq.s32.totalorder %s16, 0
    %p95 = por %p93, %p94
    %s97 = sadd.s32 %s96, 1
    %p100 = scmp.eq.s32.totalorder %s10, 7
    %p101 = scmp.ne.s32.totalorder %s96, %s98
    %p102 = scmp.eq.s32.totalorder %s10, 0
    %p103 = por %p101, %p102
    %p104 = scmp.ne.s32.totalorder %s96, %s98
    %p105 = scmp.eq.s32.totalorder %s15, 7
    %p106 = por %p104, %p105
    %p107 = scmp.ne.s32.totalorder %s98, %s99
    %p108 = scmp.eq.s32.totalorder %s15, 0
    %p109 = por %p107, %p108
    %p110 = scmp.ne.s32.totalorder %s98, %s99
    %p111 = scmp.eq.s32.totalorder %s16, 7
    %p112 = por %p110, %p111
    %p114 = scmp.ne.s32.totalorder %s99, %s113
    %p115 = scmp.eq.s32.totalorder %s16, 0
    %p116 = por %p114, %p115
    %s117 = ssub.s32 %s10, %s17
    %p118 = scmp.eq.s32.totalorder %s117, 0
    %s120 = sadd.s32 %s119, 1
    %s121 = scalar_select %p118, %s119, %s120
    %p124 = pneg %p118
    %p125 = scmp.eq.s32.totalorder %s10, 7
    %p126 = por %p124, %p125
    %p127 = scmp.ne.s32.totalorder %s119, %s122
    %p128 = scmp.eq.s32.totalorder %s10, 0
    %p129 = por %p127, %p128
    %p130 = scmp.ne.s32.totalorder %s119, %s122
    %p131 = scmp.eq.s32.totalorder %s15, 7
    %p132 = por %p130, %p131
    %p133 = scmp.ne.s32.totalorder %s122, %s123
    %p134 = scmp.eq.s32.totalorder %s15, 0
    %p135 = por %p133, %p134
    %p136 = scmp.ne.s32.totalorder %s122, %s123
    %p137 = scmp.eq.s32.totalorder %s16, 7
    %p138 = por %p136, %p137
    %p140 = scmp.ne.s32.totalorder %s123, %s139
    %p141 = scmp.eq.s32.totalorder %s16, 0
    %p142 = por %p140, %p141
    %p143 = scmp.le.s32.totalorder 1, %s10
    %p144 = scmp.lt.s32.totalorder %s10, 9
    %p145 = pnand %p143, %p144
    %p146 = pneg %p145
    // Predicated region
    $region9: #{_lambda_.1} parent=5 // pred_check
      _
    $region10: #{_lambda_.1} parent=5 // pred_check_branch
      %148 = sbr.rel (%p145) target = $region12
    $region11: #{_lambda_.1} parent=5 // pred_region
      %s149 = ssub.s32 %s10, 1
      // Predicated region
      $region13: #{_lambda_.1} parent=11 // pred_check
        %p150 = pneg %p109
      $region14: #{_lambda_.1} parent=11 // pred_check_branch
        %152 = sbr.rel (%p150) target = $region16
      $region15: #{_lambda_.1} parent=11 // pred_region
        _
      $region16: #{_lambda_.1} parent=11 // pred_fallthru
        _
    $region12: #{_lambda_.1} parent=5 // pred_fallthru
      _
    %p153 = scmp.lt.s32.totalorder %s10, 8
    // Predicated region
    $region17: #{_lambda_.1} parent=5 // pred_check
      %p154 = pneg %p153
    $region18: #{_lambda_.1} parent=5 // pred_check_branch
      %156 = sbr.rel (%p154) target = $region20
    $region19: #{_lambda_.1} parent=5 // pred_region
      // Predicated region
      $region21: #{_lambda_.1} parent=19 // pred_check
        %p157 = pneg %p30
      $region22: #{_lambda_.1} parent=19 // pred_check_branch
        %159 = sbr.rel (%p157) target = $region24
      $region23: #{_lambda_.1} parent=19 // pred_region
        %p160 = scmp.lt.s32.totalorder %s10, 7
        %s161 = scalar_select %p160, %s10, 7
        %s162 = smul.addr %s161, 2
        %s163 = smul.addr %s162, 8
        %s164 = scalar_lea.vmem %s0, %s163
      $region24: #{_lambda_.1} parent=19 // pred_fallthru
        _
      // Predicated region
      $region25: #{_lambda_.1} parent=19 // pred_check
        %p165 = pneg %p56
      $region26: #{_lambda_.1} parent=19 // pred_check_branch
        %167 = sbr.rel (%p165) target = $region28
      $region27: #{_lambda_.1} parent=19 // pred_region
        %p168 = scmp.lt.s32.totalorder %s10, 7
        %s169 = scalar_select %p168, %s10, 7
        %s170 = smul.addr %s169, 2
        %s171 = smul.addr %s170, 8
        %s172 = scalar_lea.vmem %s1, %s171
      $region28: #{_lambda_.1} parent=19 // pred_fallthru
        _
      // Predicated region
      $region29: #{_lambda_.1} parent=19 // pred_check
        %p173 = pneg %p82
      $region30: #{_lambda_.1} parent=19 // pred_check_branch
        %175 = sbr.rel (%p173) target = $region32
      $region31: #{_lambda_.1} parent=19 // pred_region
        %p176 = scmp.lt.s32.totalorder %s10, 7
        %s177 = scalar_select %p176, %s10, 7
        %s178 = smul.addr %s177, 2
        %s179 = smul.addr %s178, 8
        %s180 = scalar_lea.vmem %s2, %s179
      $region32: #{_lambda_.1} parent=19 // pred_fallthru
        _
    $region20: #{_lambda_.1} parent=5 // pred_fallthru
      _
    %p181 = scmp.le.s32.totalorder 1, %s10
    %p182 = scmp.lt.s32.totalorder %s10, 9
    %p183 = pnand %p181, %p182
    %p184 = pneg %p183
    // Predicated region
    $region33: #{_lambda_.1} parent=5 // pred_check
      _
    $region34: #{_lambda_.1} parent=5 // pred_check_branch
      %186 = sbr.rel (%p183) target = $region36
    $region35: #{_lambda_.1} parent=5 // pred_region
      %s187 = ssub.s32 %s10, 1
      %p188 = scmp.lt.s32.totalorder %s15, 7
      %s189 = scalar_select %p188, %s15, 7
      %s190 = smul.addr %s189, 2
      %s191 = smul.addr %s190, 8
      %s192 = scalar_lea.vmem %s0, %s191
      %p193 = pneg %p36
      %p194 = pneg %p33
      %p195 = scmp.lt.s32.totalorder %s15, 7
      %s196 = scalar_select %p195, %s15, 7
      %s197 = smul.addr %s196, 2
      %s198 = smul.addr %s197, 8
      %s199 = scalar_lea.vmem %s1, %s198
      %p200 = pneg %p62
      %p201 = pneg %p59
      %p202 = scmp.lt.s32.totalorder %s15, 7
      %s203 = scalar_select %p202, %s15, 7
      %s204 = smul.addr %s203, 2
      %s205 = smul.addr %s204, 8
      %s206 = scalar_lea.vmem %s2, %s205
      %p207 = pneg %p88
      %p208 = pneg %p85
      %p209 = pneg %p109
      %p210 = pneg %p106
      %p211 = pneg %p135
      %p212 = pneg %p132
      %p213 = scmp.lt.s32.totalorder %s15, 7
      %s214 = scalar_select %p213, %s15, 7
      %s215 = scalar_lea.vmem %s4, %s214
      %p216 = scmp.lt.s32.totalorder %s15, 7
      %s217 = scalar_select %p216, %s15, 7
      %s218 = smul.addr %s217, 2
      %s219 = smul.addr %s218, 8
      %s220 = scalar_lea.vmem %s0, %s219
      %p221 = scmp.lt.s32.totalorder %s15, 7
      %s222 = scalar_select %p221, %s15, 7
      %s223 = smul.addr %s222, 2
      %s224 = smul.addr %s223, 8
      %s225 = scalar_lea.vmem %s1, %s224
      %p226 = scmp.lt.s32.totalorder %s15, 7
      %s227 = scalar_select %p226, %s15, 7
      %s228 = smul.addr %s227, 2
      %s229 = smul.addr %s228, 8
      %s230 = scalar_lea.vmem %s2, %s229
      %p231 = scmp.lt.s32.totalorder %s15, 7
      %s232 = scalar_select %p231, %s15, 7
      %s233 = scalar_lea.vmem %s4, %s232
      %v234 = vld [vmem:[%s220] sm:$0xff]
      %v235 = vld [vmem:[%s220 + $0x8] sm:$0xff]
      %v236 = vld [vmem:[%s225] sm:$0xff]
      %v237 = vld [vmem:[%s225 + $0x8] sm:$0xff]
      %v238 = vld [vmem:[%s230] sm:$0xff]
      %v239 = vld [vmem:[%s230 + $0x8] sm:$0xff]
      %v240 = vld [vmem:[%s3] sm:$0xf]
      %v241 = vld [vmem:[%s3 + $0x4] sm:$0x1]
      %v242 = vld [vmem:[%s3] sm:$0xff]
      %v243 = vld [vmem:[%s3 + $0x8] sm:$0x1]
      %vm244 = vcmask 31744
      %v246 = vsel %vm244, %v238, 0
      %v249 = vsel %vm244, %v239, 0
      %vm251 = vcmask 1043456
      %v253 = vsel %vm251, %v240, 0
      %255 = vmatprep.subr.mxu0 0.0
      %256 = vmatpush1.msra.mxu0 %v253
      %257 = vmatprep.subr.mxu0 0.0
      %258 = vmatpush1.msra.mxu0 0.0
      %259 = vmatprep.subr.mxu0 0.0
      %260 = vmatpush1.msra.mxu0 0.0
      %261 = vmatprep.subr.mxu0 0.0
      %262 = vmatpush1.msra.mxu0 0.0
      %263 = vmatprep.subr.mxu0 0.0
      %264 = vmatpush1.msra.mxu0 0.0
      %265 = vmatprep.subr.mxu0 0.0
      %266 = vmatpush1.msra.mxu0 0.0
      %267 = vmatprep.subr.mxu0 0.0
      %268 = vmatpush1.msra.mxu0 0.0
      %269 = vmatprep.subr.mxu0 0.0
      %270 = vmatpush1.msra.mxu0 0.0
      %271 = vmatprep.subr.mxu0 0.0
      %272 = vmatpush1.msra.mxu0 0.0
      %273 = vmatprep.subr.mxu0 0.0
      %274 = vmatpush1.msra.mxu0 0.0
      %275 = vmatprep.subr.mxu0 0.0
      %276 = vmatpush1.msra.mxu0 0.0
      %277 = vmatprep.subr.mxu0 0.0
      %278 = vmatpush1.msra.mxu0 0.0
      %279 = vmatprep.subr.mxu0 0.0
      %280 = vmatpush1.msra.mxu0 0.0
      %281 = vmatprep.subr.mxu0 0.0
      %282 = vmatpush1.msra.mxu0 0.0
      %283 = vmatprep.subr.mxu0 0.0
      %284 = vmatpush1.msra.mxu0 0.0
      %285 = vmatprep.subr.mxu0 0.0
      %286 = vmatpush1.msra.mxu0 0.0
      %287 = vmatprep.subr.mxu0 0.0
      %288 = vmatpush1.msra.mxu0 0.0
      %289 = vmatprep.subr.mxu0 0.0
      %290 = vmatpush1.msra.mxu0 0.0
      %291 = vmatprep.subr.mxu0 0.0
      %292 = vmatpush1.msra.mxu0 0.0
      %293 = vmatprep.subr.mxu0 0.0
      %294 = vmatpush1.msra.mxu0 0.0
      %295 = vmatprep.subr.mxu0 0.0
      %296 = vmatpush1.msra.mxu0 0.0
      %297 = vmatprep.subr.mxu0 0.0
      %298 = vmatpush1.msra.mxu0 0.0
      %299 = vmatprep.subr.mxu0 0.0
      %300 = vmatpush1.msra.mxu0 0.0
      %301 = vmatprep.subr.mxu0 0.0
      %302 = vmatpush1.msra.mxu0 0.0
      %303 = vmatprep.subr.mxu0 0.0
      %304 = vmatpush1.msra.mxu0 0.0
      %305 = vmatprep.subr.mxu0 0.0
      %306 = vmatpush1.msra.mxu0 0.0
      %307 = vmatprep.subr.mxu0 0.0
      %308 = vmatpush1.msra.mxu0 0.0
      %309 = vmatprep.subr.mxu0 0.0
      %310 = vmatpush1.msra.mxu0 0.0
      %311 = vmatprep.subr.mxu0 0.0
      %312 = vmatpush1.msra.mxu0 0.0
      %313 = vmatprep.subr.mxu0 0.0
      %314 = vmatpush1.msra.mxu0 0.0
      %315 = vmatprep.subr.mxu0 0.0
      %316 = vmatpush1.msra.mxu0 0.0
      %317 = vmatprep.subr.mxu0 0.0
      %318 = vmatpush1.msra.mxu0 0.0
      %319 = vmatprep.mubr.f32.mxu0 0.0
      %320 = vmatmul.mubr.f32.gmra.mrb[0].mxu0 %v246
      %v321 = vpop.f32.mrb[0].mxu0
      %v322 = vadd.f32 0.0, %v321
      %v323 = vpop.f32.mrb[0].mxu0
      %324 = vmatprep.mubr.f32.mxu0 0.0
      %325 = vmatmul.mubr.f32.gmra.mrb[0].mxu0 %v249
      %v326 = vpop.f32.mrb[0].mxu0
      %v327 = vadd.f32 0.0, %v326
      %v328 = vpop.f32.mrb[0].mxu0
      %329 = vdwg.mxu0
      %331 = vset.pattern.permute.xlu0 0
      %332 = vperm.xlu0 %331, %v241
      %v333 = vpop.permute.xlu0 %332
      %335 = vxpose.xlu0.b32.start [1/16] %v322, 128
      %336 = vxpose.xlu0.b32.cont [2/16] %v327, 128
      %337 = vxpose.xlu0.b32.cont [3/16] 0.0, 128
      %338 = vxpose.xlu0.b32.cont [4/16] 0.0, 128
      %339 = vxpose.xlu0.b32.cont [5/16] 0.0, 128
      %340 = vxpose.xlu0.b32.cont [6/16] 0.0, 128
      %341 = vxpose.xlu0.b32.cont [7/16] 0.0, 128
      %342 = vxpose.xlu0.b32.cont [8/16] 0.0, 128
      %343 = vxpose.xlu0.b32.cont [9/16] 0.0, 128
      %344 = vxpose.xlu0.b32.cont [10/16] 0.0, 128
      %345 = vxpose.xlu0.b32.cont [11/16] 0.0, 128
      %346 = vxpose.xlu0.b32.cont [12/16] 0.0, 128
      %347 = vxpose.xlu0.b32.cont [13/16] 0.0, 128
      %348 = vxpose.xlu0.b32.cont [14/16] 0.0, 128
      %349 = vxpose.xlu0.b32.cont [15/16] 0.0, 128
      %350 = vxpose.xlu0.b32.end [16/16] 0.0, 128
      %v351 = vpop.trf.xlu0
      %v352 = vpop.trf.xlu0
      %v353 = vpop.trf.xlu0
      %v354 = vpop.trf.xlu0
      %v355 = vpop.trf.xlu0
      %v356 = vpop.trf.xlu0
      %v357 = vpop.trf.xlu0
      %v358 = vpop.trf.xlu0
      %v359 = vpop.trf.xlu0
      %v360 = vpop.trf.xlu0
      %v361 = vpop.trf.xlu0
      %v362 = vpop.trf.xlu0
      %v363 = vpop.trf.xlu0
      %v364 = vpop.trf.xlu0
      %v365 = vpop.trf.xlu0
      %v366 = vpop.trf.xlu0
      %vm367 = vcmask 130048
      %v369 = vsel %vm367, %v351, 0
      %371 = vmatprep.subr.mxu0 0.0
      %372 = vmatpush1.msra.mxu0 %v234
      %373 = vmatprep.subr.mxu0 0.0
      %374 = vmatpush1.msra.mxu0 %v235
      %375 = vmatprep.subr.mxu0 0.0
      %376 = vmatpush1.msra.mxu0 0.0
      %377 = vmatprep.subr.mxu0 0.0
      %378 = vmatpush1.msra.mxu0 0.0
      %379 = vmatprep.subr.mxu0 0.0
      %380 = vmatpush1.msra.mxu0 0.0
      %381 = vmatprep.subr.mxu0 0.0
      %382 = vmatpush1.msra.mxu0 0.0
      %383 = vmatprep.subr.mxu0 0.0
      %384 = vmatpush1.msra.mxu0 0.0
      %385 = vmatprep.subr.mxu0 0.0
      %386 = vmatpush1.msra.mxu0 0.0
      %387 = vmatprep.subr.mxu0 0.0
      %388 = vmatpush1.msra.mxu0 0.0
      %389 = vmatprep.subr.mxu0 0.0
      %390 = vmatpush1.msra.mxu0 0.0
      %391 = vmatprep.subr.mxu0 0.0
      %392 = vmatpush1.msra.mxu0 0.0
      %393 = vmatprep.subr.mxu0 0.0
      %394 = vmatpush1.msra.mxu0 0.0
      %395 = vmatprep.subr.mxu0 0.0
      %396 = vmatpush1.msra.mxu0 0.0
      %397 = vmatprep.subr.mxu0 0.0
      %398 = vmatpush1.msra.mxu0 0.0
      %399 = vmatprep.subr.mxu0 0.0
      %400 = vmatpush1.msra.mxu0 0.0
      %401 = vmatprep.subr.mxu0 0.0
      %402 = vmatpush1.msra.mxu0 0.0
      %403 = vmatprep.subr.mxu0 0.0
      %404 = vmatpush1.msra.mxu0 0.0
      %405 = vmatprep.subr.mxu0 0.0
      %406 = vmatpush1.msra.mxu0 0.0
      %407 = vmatprep.subr.mxu0 0.0
      %408 = vmatpush1.msra.mxu0 0.0
      %409 = vmatprep.subr.mxu0 0.0
      %410 = vmatpush1.msra.mxu0 0.0
      %411 = vmatprep.subr.mxu0 0.0
      %412 = vmatpush1.msra.mxu0 0.0
      %413 = vmatprep.subr.mxu0 0.0
      %414 = vmatpush1.msra.mxu0 0.0
      %415 = vmatprep.subr.mxu0 0.0
      %416 = vmatpush1.msra.mxu0 0.0
      %417 = vmatprep.subr.mxu0 0.0
      %418 = vmatpush1.msra.mxu0 0.0
      %419 = vmatprep.subr.mxu0 0.0
      %420 = vmatpush1.msra.mxu0 0.0
      %421 = vmatprep.subr.mxu0 0.0
      %422 = vmatpush1.msra.mxu0 0.0
      %423 = vmatprep.subr.mxu0 0.0
      %424 = vmatpush1.msra.mxu0 0.0
      %425 = vmatprep.subr.mxu0 0.0
      %426 = vmatpush1.msra.mxu0 0.0
      %427 = vmatprep.subr.mxu0 0.0
      %428 = vmatpush1.msra.mxu0 0.0
      %429 = vmatprep.subr.mxu0 0.0
      %430 = vmatpush1.msra.mxu0 0.0
      %431 = vmatprep.subr.mxu0 0.0
      %432 = vmatpush1.msra.mxu0 0.0
      %433 = vmatprep.subr.mxu0 0.0
      %434 = vmatpush1.msra.mxu0 0.0
      %435 = vmatprep.mubr.f32.mxu0 0.0
      %436 = vmatmul.mubr.f32.gmra.mrb[0].mxu0 %v369
      %v437 = vpop.f32.mrb[0].mxu0
      %v438 = vadd.f32 %v333, %v437
      %v439 = vpop.f32.mrb[0].mxu0
      %440 = vdwg.mxu0
      %v442 = vsel %vm367, %v438, 0
      %444 = vmatprep.subr.mxu0 0.0
      %445 = vmatpush1.msra.mxu0 %v236
      %446 = vmatprep.subr.mxu0 0.0
      %447 = vmatpush1.msra.mxu0 %v237
      %448 = vmatprep.subr.mxu0 0.0
      %449 = vmatpush1.msra.mxu0 0.0
      %450 = vmatprep.subr.mxu0 0.0
      %451 = vmatpush1.msra.mxu0 0.0
      %452 = vmatprep.subr.mxu0 0.0
      %453 = vmatpush1.msra.mxu0 0.0
      %454 = vmatprep.subr.mxu0 0.0
      %455 = vmatpush1.msra.mxu0 0.0
      %456 = vmatprep.subr.mxu0 0.0
      %457 = vmatpush1.msra.mxu0 0.0
      %458 = vmatprep.subr.mxu0 0.0
      %459 = vmatpush1.msra.mxu0 0.0
      %460 = vmatprep.subr.mxu0 0.0
      %461 = vmatpush1.msra.mxu0 0.0
      %462 = vmatprep.subr.mxu0 0.0
      %463 = vmatpush1.msra.mxu0 0.0
      %464 = vmatprep.subr.mxu0 0.0
      %465 = vmatpush1.msra.mxu0 0.0
      %466 = vmatprep.subr.mxu0 0.0
      %467 = vmatpush1.msra.mxu0 0.0
      %468 = vmatprep.subr.mxu0 0.0
      %469 = vmatpush1.msra.mxu0 0.0
      %470 = vmatprep.subr.mxu0 0.0
      %471 = vmatpush1.msra.mxu0 0.0
      %472 = vmatprep.subr.mxu0 0.0
      %473 = vmatpush1.msra.mxu0 0.0
      %474 = vmatprep.subr.mxu0 0.0
      %475 = vmatpush1.msra.mxu0 0.0
      %476 = vmatprep.subr.mxu0 0.0
      %477 = vmatpush1.msra.mxu0 0.0
      %478 = vmatprep.subr.mxu0 0.0
      %479 = vmatpush1.msra.mxu0 0.0
      %480 = vmatprep.subr.mxu0 0.0
      %481 = vmatpush1.msra.mxu0 0.0
      %482 = vmatprep.subr.mxu0 0.0
      %483 = vmatpush1.msra.mxu0 0.0
      %484 = vmatprep.subr.mxu0 0.0
      %485 = vmatpush1.msra.mxu0 0.0
      %486 = vmatprep.subr.mxu0 0.0
      %487 = vmatpush1.msra.mxu0 0.0
      %488 = vmatprep.subr.mxu0 0.0
      %489 = vmatpush1.msra.mxu0 0.0
      %490 = vmatprep.subr.mxu0 0.0
      %491 = vmatpush1.msra.mxu0 0.0
      %492 = vmatprep.subr.mxu0 0.0
      %493 = vmatpush1.msra.mxu0 0.0
      %494 = vmatprep.subr.mxu0 0.0
      %495 = vmatpush1.msra.mxu0 0.0
      %496 = vmatprep.subr.mxu0 0.0
      %497 = vmatpush1.msra.mxu0 0.0
      %498 = vmatprep.subr.mxu0 0.0
      %499 = vmatpush1.msra.mxu0 0.0
      %500 = vmatprep.subr.mxu0 0.0
      %501 = vmatpush1.msra.mxu0 0.0
      %502 = vmatprep.subr.mxu0 0.0
      %503 = vmatpush1.msra.mxu0 0.0
      %504 = vmatprep.subr.mxu0 0.0
      %505 = vmatpush1.msra.mxu0 0.0
      %506 = vmatprep.subr.mxu0 0.0
      %507 = vmatpush1.msra.mxu0 0.0
      %508 = vmatprep.mubr.f32.mxu0 0.0
      %509 = vmatmul.mubr.f32.gmra.mrb[0].mxu0 %v442
      %v510 = vpop.f32.mrb[0].mxu0
      %v511 = vadd.f32 0.0, %v510
      %v512 = vpop.f32.mrb[0].mxu0
      %513 = vdwg.mxu0
      %515 = vrot.lane.b32.xlu0 %v242, 127
      %v516 = vpop.permute.xlu0 %515
      %519 = vrot.lane.b32.xlu0 %v243, 127
      %v520 = vpop.permute.xlu0 %519
      %vm522 = vcmask 64512
      %v524 = vsel %vm522, %v511, 0
      %526 = vmatprep.subr.mxu0 0.0
      %527 = vmatpush1.msra.mxu0 %v516
      %528 = vmatprep.subr.mxu0 0.0
      %529 = vmatpush1.msra.mxu0 0.0
      %530 = vmatprep.subr.mxu0 0.0
      %531 = vmatpush1.msra.mxu0 0.0
      %532 = vmatprep.subr.mxu0 0.0
      %533 = vmatpush1.msra.mxu0 0.0
      %534 = vmatprep.subr.mxu0 0.0
      %535 = vmatpush1.msra.mxu0 0.0
      %536 = vmatprep.subr.mxu0 0.0
      %537 = vmatpush1.msra.mxu0 0.0
      %538 = vmatprep.subr.mxu0 0.0
      %539 = vmatpush1.msra.mxu0 0.0
      %540 = vmatprep.subr.mxu0 0.0
      %541 = vmatpush1.msra.mxu0 0.0
      %542 = vmatprep.subr.mxu0 0.0
      %543 = vmatpush1.msra.mxu0 0.0
      %544 = vmatprep.subr.mxu0 0.0
      %545 = vmatpush1.msra.mxu0 0.0
      %546 = vmatprep.subr.mxu0 0.0
      %547 = vmatpush1.msra.mxu0 0.0
      %548 = vmatprep.subr.mxu0 0.0
      %549 = vmatpush1.msra.mxu0 0.0
      %550 = vmatprep.subr.mxu0 0.0
      %551 = vmatpush1.msra.mxu0 0.0
      %552 = vmatprep.subr.mxu0 0.0
      %553 = vmatpush1.msra.mxu0 0.0
      %554 = vmatprep.subr.mxu0 0.0
      %555 = vmatpush1.msra.mxu0 0.0
      %556 = vmatprep.subr.mxu0 0.0
      %557 = vmatpush1.msra.mxu0 0.0
      %558 = vmatprep.subr.mxu0 0.0
      %559 = vmatpush1.msra.mxu0 0.0
      %560 = vmatprep.subr.mxu0 0.0
      %561 = vmatpush1.msra.mxu0 0.0
      %562 = vmatprep.subr.mxu0 0.0
      %563 = vmatpush1.msra.mxu0 0.0
      %564 = vmatprep.subr.mxu0 0.0
      %565 = vmatpush1.msra.mxu0 0.0
      %566 = vmatprep.subr.mxu0 0.0
      %567 = vmatpush1.msra.mxu0 0.0
      %568 = vmatprep.subr.mxu0 0.0
      %569 = vmatpush1.msra.mxu0 0.0
      %570 = vmatprep.subr.mxu0 0.0
      %571 = vmatpush1.msra.mxu0 0.0
      %572 = vmatprep.subr.mxu0 0.0
      %573 = vmatpush1.msra.mxu0 0.0
      %574 = vmatprep.subr.mxu0 0.0
      %575 = vmatpush1.msra.mxu0 0.0
      %576 = vmatprep.subr.mxu0 0.0
      %577 = vmatpush1.msra.mxu0 0.0
      %578 = vmatprep.subr.mxu0 0.0
      %579 = vmatpush1.msra.mxu0 0.0
      %580 = vmatprep.subr.mxu0 0.0
      %581 = vmatpush1.msra.mxu0 0.0
      %582 = vmatprep.subr.mxu0 0.0
      %583 = vmatpush1.msra.mxu0 0.0
      %584 = vmatprep.subr.mxu0 0.0
      %585 = vmatpush1.msra.mxu0 0.0
      %586 = vmatprep.subr.mxu0 0.0
      %587 = vmatpush1.msra.mxu0 0.0
      %588 = vmatprep.subr.mxu0 0.0
      %589 = vmatpush1.msra.mxu0 0.0
      %590 = vmatprep.mubr.f32.mxu0 0.0
      %591 = vmatmul.mubr.f32.gmra.mrb[0].mxu0 %v524
      %v592 = vpop.f32.mrb[0].mxu0
      %v593 = vadd.f32 %v520, %v592
      %v594 = vpop.f32.mrb[0].mxu0
      %595 = vdwg.mxu0
      %vm596 = vcmask 8192
      %597 = vst.msk [vmem:[%s233] sm:$0x1] %vm596, %v593
      %p598 = scmp.lt.s32.totalorder %s15, 7
      %s599 = scalar_select %p598, %s15, 7
      %s600 = scalar_lea.vmem %s4, %s599
      // Predicated region
      $region37: #{_lambda_.1} parent=35 // pred_check
        %p601 = pneg %p132
      $region38: #{_lambda_.1} parent=35 // pred_check_branch
        %603 = sbr.rel (%p601) target = $region40
      $region39: #{_lambda_.1} parent=35 // pred_region
        _
      $region40: #{_lambda_.1} parent=35 // pred_fallthru
        _
    $region36: #{_lambda_.1} parent=5 // pred_fallthru
      _
    %p604 = scmp.le.s32.totalorder 2, %s10
    // Predicated region
    $region41: #{_lambda_.1} parent=5 // pred_check
      %p605 = pneg %p604
    $region42: #{_lambda_.1} parent=5 // pred_check_branch
      %607 = sbr.rel (%p605) target = $region44
    $region43: #{_lambda_.1} parent=5 // pred_region
      %s608 = ssub.s32 %s10, 2
      // Predicated region
      $region45: #{_lambda_.1} parent=43 // pred_check
        %p609 = pneg %p138
      $region46: #{_lambda_.1} parent=43 // pred_check_branch
        %611 = sbr.rel (%p609) target = $region48
      $region47: #{_lambda_.1} parent=43 // pred_region
        %p612 = scmp.lt.s32.totalorder %s16, 7
        %s613 = scalar_select %p612, %s16, 7
        %s614 = scalar_lea.vmem %s4, %s613
      $region48: #{_lambda_.1} parent=43 // pred_fallthru
        _
    $region44: #{_lambda_.1} parent=5 // pred_fallthru
      _
  $region6: #{_lambda_.1} parent=0 // loop_footer
    %s14 = sadd.s32 1, %s10
  $region7: #{_lambda_.1} parent=0 // loop_footer_branch
    %9 = sbr.rel target = $region3
  $region8: #{_lambda_.1} parent=0 // loop_exit
    _

</llo_original>
